<compile_context>
chip_gen: v6e
topology: v6e:2x2x1
jax: 0.10.0
libtpu: 0.0.40
codegen_flags: <defaults>
</compile_context>

<pallas_src>
import jax
import jax.numpy as jnp
from jax.experimental import pallas as pl
from jax.experimental.pallas import tpu as pltpu


def _round_up(n, m):
    return (n + m - 1) // m * m


def cnn_pool_kernel(x_ref, w_ref, b_ref, o_ref):
    # x_ref: (TB, L, D)   compute dtype
    # w_ref: (D, 3*D)     compute dtype, columns = [W_k0 | W_k1 | W_k2]
    # b_ref: (1, D)       float32
    # o_ref: (TB, D)      output dtype
    TB, L, D = x_ref.shape
    M = TB * L

    x = x_ref[...].reshape(M, D)          # flatten batch*seq onto the MXU M dim

    # One N-fused MXU matmul: all three conv taps share the same LHS.
    z = jnp.dot(x, w_ref[...], preferred_element_type=jnp.float32)   # (M, 3D) f32

    # Row position inside its length-L segment (for boundary masking).
    pos = jax.lax.broadcasted_iota(jnp.int32, (M, 1), 0) % L
    zero = jnp.zeros((), jnp.float32)

    z_prev = z[:, 0:D]           # x[l] @ W0  -> contributes to y[l+1]
    z_mid = z[:, D:2 * D]        # x[l] @ W1  -> contributes to y[l]
    z_next = z[:, 2 * D:3 * D]   # x[l] @ W2  -> contributes to y[l-1]

    # Shift prev/next slabs along the flattened row axis via the XLU; zero-mask
    # the single wrapped / cross-example row per length-L segment (== the
    # conv's zero padding).  Masking the f32 output slab is exact: the masked
    # input row would have been all-zeros, and matmul is linear per row.
    y = z_mid
    y = y + jnp.where(pos == 0, zero, pltpu.roll(z_prev, 1, 0))          # += x[l-1] @ W0
    y = y + jnp.where(pos == L - 1, zero, pltpu.roll(z_next, M - 1, 0))  # += x[l+1] @ W2

    # Global max over the sequence; bias added AFTER the max (exact: bias is
    # constant along L).
    out = jnp.max(y.reshape(TB, L, D), axis=1) + b_ref[...]
    o_ref[...] = out.astype(o_ref.dtype)


def _choose_tb(B, L, D, cdt_itemsize):
    """Batch tile: ~2048 MXU rows per step, 8-aligned, bounded by a VMEM budget
    sized for the smallest generation (v7x), and split so the grid keeps >= 2
    steps when the batch allows it (v7x megacore)."""
    lane = 128
    d_lane = _round_up(D, lane)          # lane-padded VMEM width of x / y tiles
    n_lane = _round_up(3 * D, lane)      # lane-padded VMEM width of the fused z
    # Per batch-row VMEM bytes: 2 pipeline buffers of x + generous f32 temps
    # (fused z, two rolled/masked slabs, reshaped copy).
    per_row = L * (2 * d_lane * cdt_itemsize + (n_lane + 4 * d_lane) * 4)
    w_vmem = 2 * _round_up(D, 8) * n_lane * cdt_itemsize   # double-buffered weights
    budget = 24 * 1024 * 1024                               # fits every generation
    avail = max(budget - w_vmem, 0)
    tb_vmem = max(8, (avail // per_row) // 8 * 8)
    tb_rows = max(8, _round_up(max(1, 2048 // L), 8))       # ~2K-row MXU blocks
    tb = min(tb_rows, tb_vmem)

    b8 = _round_up(B, 8)
    tb = min(tb, b8)
    # Keep >= 2 grid steps when the batch is big enough (both v7x TensorCores).
    if b8 < 2 * tb and b8 >= 16:
        tb = max(8, (b8 // 2) // 8 * 8)
    return tb


def cnn_pool(x, weight, bias, *, compute_dtype=jnp.bfloat16):
    """Conv1d(D, D, k=3, pad=1) over the sequence axis + global max pool.

    x: (B, L, D); weight: (D_out, D_in, 3) (PyTorch Conv1d layout); bias: (D,).
    compute_dtype: matmul operand dtype.  bf16 is the default on every TPU
    generation (bf16-native MXU, half the x DMA bytes); accumulation and the
    max/bias epilogue stay f32.  Pass jnp.float32 for bit-tight results.  If
    activations are produced upstream, produce them in bf16 directly so the
    cast fuses away.
    """
    B, L, D = x.shape
    cdt = jnp.dtype(compute_dtype) if compute_dtype is not None else jnp.dtype(x.dtype)

    TB = _choose_tb(B, L, D, cdt.itemsize)
    Bp = _round_up(B, TB)

    # x keeps its natural (L, D) extents inside the block -> no channel padding
    # and no padded HBM copy of x.  Only the batch axis is padded (cheap, and
    # skipped entirely when B is already a multiple of TB).
    xc = x.astype(cdt)
    xp = xc if Bp == B else jnp.pad(xc, ((0, Bp - B), (0, 0), (0, 0)))

    # N-fused weight: (D_in, 3*D_out), slab k holds weight[:, :, k].T.
    w_cat = jnp.transpose(weight, (1, 2, 0)).reshape(D, 3 * D).astype(cdt)
    bp = bias.reshape(1, D).astype(jnp.float32)

    flops = 2 * 3 * B * L * D * D
    bytes_accessed = int(
        xp.size * xp.dtype.itemsize
        + w_cat.size * w_cat.dtype.itemsize
        + bp.size * 4
        + Bp * D * jnp.dtype(x.dtype).itemsize
    )

    out = pl.pallas_call(
        cnn_pool_kernel,
        out_shape=jax.ShapeDtypeStruct((Bp, D), x.dtype),
        grid_spec=pltpu.PrefetchScalarGridSpec(
            num_scalar_prefetch=0,
            grid=(Bp // TB,),
            in_specs=[
                pl.BlockSpec((TB, L, D), lambda i: (i, 0, 0)),
                pl.BlockSpec((D, 3 * D), lambda i: (0, 0)),
                pl.BlockSpec((1, D), lambda i: (0, 0)),
            ],
            out_specs=pl.BlockSpec((TB, D), lambda i: (i, 0)),
        ),
        compiler_params=pltpu.CompilerParams(
            dimension_semantics=("parallel",),
            vmem_limit_bytes=40 * 1024 * 1024,
        ),
        cost_estimate=pl.CostEstimate(
            flops=flops, transcendentals=0, bytes_accessed=bytes_accessed),
    )(xp, w_cat, bp)

    return out[:B]


def cnn_pool_reference(x, weight, bias):
    """Plain-JAX reference of the PyTorch forward."""
    B, L, D = x.shape
    w = jnp.transpose(weight, (2, 1, 0))              # (3, D_in, D_out)
    zrow = jnp.zeros((B, 1, D), dtype=x.dtype)
    x_prev = jnp.concatenate([zrow, x[:, :-1]], axis=1)
    x_next = jnp.concatenate([x[:, 1:], zrow], axis=1)
    y = (jnp.einsum('bld,de->ble', x_prev, w[0])
         + jnp.einsum('bld,de->ble', x, w[1])
         + jnp.einsum('bld,de->ble', x_next, w[2]))
    y = y + bias.reshape(1, 1, D)
    return jnp.max(y, axis=1)                         # (B, D)


if __name__ == "__main__":
    key = jax.random.PRNGKey(0)
    k_x, k_w, k_b = jax.random.split(key, 3)

    B, L, D = 2, 16, 32                               # d_model = 32

    # Deterministic parameter init mimicking PyTorch Conv1d defaults:
    # uniform(-bound, bound) with bound = 1/sqrt(fan_in), fan_in = D * 3.
    fan_in = D * 3
    bound = 1.0 / (fan_in ** 0.5)
    weight = jax.random.uniform(k_w, (D, D, 3), jnp.float32, -bound, bound)
    bias = jax.random.uniform(k_b, (D,), jnp.float32, -bound, bound)

    x = jax.random.normal(k_x, (B, L, D), jnp.float32)

    ref = cnn_pool_reference(x, weight, bias)

    # f32 compute path: bit-tight check.
    out_f32 = jax.block_until_ready(cnn_pool(x, weight, bias, compute_dtype=jnp.float32))
    assert out_f32.shape == (B, D)
    assert jnp.allclose(out_f32, ref, atol=1e-4, rtol=1e-4), "f32 mismatch vs reference"

    # Default bf16 compute path: looser tolerance (operands rounded to bf16).
    out_bf16 = jax.block_until_ready(cnn_pool(x, weight, bias))
    assert out_bf16.shape == (B, D)
    assert jnp.allclose(out_bf16, ref, atol=3e-2, rtol=3e-2), "bf16 mismatch vs reference"

    print("KERNEL_OK")
</pallas_src>

<mosaic_0001>
module attributes {stable_mosaic.version = 11 : i64} {
  func.func @cnn_pool_kernel(%arg0: i32, %arg1: memref<8x16x32xf32, #tpu.memory_space<vmem>>, %arg2: memref<32x96xf32, #tpu.memory_space<vmem>>, %arg3: memref<1x32xf32, #tpu.memory_space<vmem>>, %arg4: memref<8x32xf32, #tpu.memory_space<vmem>>) attributes {dimension_semantics = [#tpu.dimension_semantics<parallel>], iteration_bounds = array<i64: 1>, scalar_prefetch = 0 : i64, scratch_operands = 0 : i64, tpu.core_type = #tpu.core_type<tc>, window_params = [{transform_indices = @transform_0, window_bounds = array<i64: 8, 16, 32>}, {pipeline_mode = #tpu.pipeline_mode<synchronous>, transform_indices = @transform_1, window_bounds = array<i64: 32, 96>}, {pipeline_mode = #tpu.pipeline_mode<synchronous>, transform_indices = @transform_2, window_bounds = array<i64: 1, 32>}, {transform_indices = @transform_3, window_bounds = array<i64: 8, 32>}]} {
    %c0 = arith.constant 0 : index
    %c0_0 = arith.constant 0 : index
    %c0_1 = arith.constant 0 : index
    %0 = vector.load %arg1[%c0, %c0_0, %c0_1] : memref<8x16x32xf32, #tpu.memory_space<vmem>>, vector<8x16x32xf32>
    %1 = vector.shape_cast %0 : vector<8x16x32xf32> to vector<128x32xf32>
    %c0_2 = arith.constant 0 : index
    %c0_3 = arith.constant 0 : index
    %2 = vector.load %arg2[%c0_2, %c0_3] : memref<32x96xf32, #tpu.memory_space<vmem>>, vector<32x96xf32>
    %cst = arith.constant dense<0.000000e+00> : vector<128x96xf32>
    %3 = tpu.matmul %1, %2, %cst {dimension_numbers = #tpu.dot_dimension_numbers<[1], [0], [0], [1], [0, 0, 1, 1], [], []>} : vector<128x32xf32>, vector<32x96xf32>, vector<128x96xf32> -> vector<128x96xf32>
    %4 = tpu.iota {dimensions = array<i32: 0>} : vector<128x1xi32>
    %c16_i32 = arith.constant 16 : i32
    %c0_i32 = arith.constant 0 : i32
    %5 = arith.cmpi eq, %c16_i32, %c0_i32 : i32
    %c1_i32 = arith.constant 1 : i32
    %6 = arith.select %5, %c1_i32, %c16_i32 : i32
    %7 = vector.broadcast %6 : i32 to vector<128x1xi32>
    %8 = arith.remsi %4, %7 : vector<128x1xi32>
    %c0_i32_4 = arith.constant 0 : i32
    %9 = vector.broadcast %c0_i32_4 : i32 to vector<128x1xi32>
    %10 = arith.cmpi ne, %8, %9 : vector<128x1xi32>
    %c0_i32_5 = arith.constant 0 : i32
    %11 = vector.broadcast %c0_i32_5 : i32 to vector<128x1xi32>
    %12 = arith.cmpi slt, %8, %11 : vector<128x1xi32>
    %c0_i32_6 = arith.constant 0 : i32
    %13 = arith.cmpi slt, %6, %c0_i32_6 : i32
    %14 = vector.broadcast %13 : i1 to vector<128x1xi1>
    %15 = vector.broadcast %14 : vector<128x1xi1> to vector<128x1xi1>
    %16 = arith.xori %12, %15 : vector<128x1xi1>
    %17 = arith.andi %16, %10 : vector<128x1xi1>
    %18 = vector.broadcast %6 : i32 to vector<128x1xi32>
    %19 = arith.addi %8, %18 : vector<128x1xi32>
    %20 = arith.select %17, %19, %8 : vector<128x1xi1>, vector<128x1xi32>
    %21 = vector.extract_strided_slice %3 {offsets = [0, 0], sizes = [128, 32], strides = [1, 1]} : vector<128x96xf32> to vector<128x32xf32>
    %22 = vector.extract_strided_slice %3 {offsets = [0, 32], sizes = [128, 32], strides = [1, 1]} : vector<128x96xf32> to vector<128x32xf32>
    %23 = vector.extract_strided_slice %3 {offsets = [0, 64], sizes = [128, 32], strides = [1, 1]} : vector<128x96xf32> to vector<128x32xf32>
    %c0_i32_7 = arith.constant 0 : i32
    %24 = vector.broadcast %c0_i32_7 : i32 to vector<128x1xi32>
    %25 = arith.cmpi eq, %20, %24 : vector<128x1xi32>
    %c1_i32_8 = arith.constant 1 : i32
    %26 = tpu.dynamic_rotate %21 by %c1_i32_8 dim 0 : vector<128x32xf32>, i32 -> vector<128x32xf32>
    %cst_9 = arith.constant 0.000000e+00 : f32
    %27 = vector.shape_cast %25 : vector<128x1xi1> to vector<128x1xi1>
    %28 = vector.broadcast %27 : vector<128x1xi1> to vector<128x32xi1>
    %29 = vector.broadcast %cst_9 : f32 to vector<128x32xf32>
    %30 = arith.select %28, %29, %26 : vector<128x32xi1>, vector<128x32xf32>
    %31 = arith.addf %22, %30 : vector<128x32xf32>
    %c15_i32 = arith.constant 15 : i32
    %32 = vector.broadcast %c15_i32 : i32 to vector<128x1xi32>
    %33 = arith.cmpi eq, %20, %32 : vector<128x1xi32>
    %c127_i32 = arith.constant 127 : i32
    %34 = tpu.dynamic_rotate %23 by %c127_i32 dim 0 : vector<128x32xf32>, i32 -> vector<128x32xf32>
    %cst_10 = arith.constant 0.000000e+00 : f32
    %35 = vector.shape_cast %33 : vector<128x1xi1> to vector<128x1xi1>
    %36 = vector.broadcast %35 : vector<128x1xi1> to vector<128x32xi1>
    %37 = vector.broadcast %cst_10 : f32 to vector<128x32xf32>
    %38 = arith.select %36, %37, %34 : vector<128x32xi1>, vector<128x32xf32>
    %39 = arith.addf %31, %38 : vector<128x32xf32>
    %40 = vector.shape_cast %39 : vector<128x32xf32> to vector<8x16x32xf32>
    %cst_11 = arith.constant dense<0xFF800000> : vector<8x32xf32>
    %41 = vector.multi_reduction <maximumf>, %40, %cst_11 [1] : vector<8x16x32xf32> to vector<8x32xf32>
    %c0_12 = arith.constant 0 : index
    %c0_13 = arith.constant 0 : index
    %42 = vector.load %arg3[%c0_12, %c0_13] : memref<1x32xf32, #tpu.memory_space<vmem>>, vector<1x32xf32>
    %43 = vector.broadcast %42 : vector<1x32xf32> to vector<8x32xf32>
    %44 = arith.addf %41, %43 : vector<8x32xf32>
    %c0_14 = arith.constant 0 : index
    %c0_15 = arith.constant 0 : index
    %45 = vector.load %arg4[%c0_14, %c0_15] : memref<8x32xf32, #tpu.memory_space<vmem>>, vector<8x32xf32>
    tpu.vector_store %arg4[%c0_14, %c0_15], %44 {strides = array<i32>} : memref<8x32xf32, #tpu.memory_space<vmem>>, vector<8x32xf32>,
    return
  }
  func.func @transform_0(%arg0: i32) -> (i32, i32, i32) {
    %c0_i32 = arith.constant 0 : i32
    %c0_i32_0 = arith.constant 0 : i32
    %c0_i32_1 = arith.constant 0 : i32
    return %arg0, %c0_i32, %c0_i32_0 : i32, i32, i32
  }
  func.func @transform_1(%arg0: i32) -> (i32, i32) {
    %c0_i32 = arith.constant 0 : i32
    %c0_i32_0 = arith.constant 0 : i32
    %c0_i32_1 = arith.constant 0 : i32
    return %c0_i32, %c0_i32_0 : i32, i32
  }
  func.func @transform_2(%arg0: i32) -> (i32, i32) {
    %c0_i32 = arith.constant 0 : i32
    %c0_i32_0 = arith.constant 0 : i32
    %c0_i32_1 = arith.constant 0 : i32
    return %c0_i32, %c0_i32_0 : i32, i32
  }
  func.func @transform_3(%arg0: i32) -> (i32, i32) {
    %c0_i32 = arith.constant 0 : i32
    %c0_i32_0 = arith.constant 0 : i32
    return %arg0, %c0_i32 : i32, i32
  }
}

</mosaic_0001>

<llo_original>
// kernel: tpu_custom_call.1
$region0: #{tpu_custom_call.1}
  #allocation0 [shape = 'u32[]', space=smem, size = 0x4, offset = 0x4, fixed_abs, tag = 'smem constant byte address 0x4 - core index']
  #allocation1 [shape = 'u32[144,128]{1,0:T(1,128)}', space=vmem, size = 0x12000, scoped, tag = 'internal scratch']
  %s0 = inlined_call_operand.hbm [shape: f32[8,16,32], index: 0, kind: input, shape index: {}]
  %s1 = inlined_call_operand.hbm [shape: f32[32,96], index: 1, kind: input, shape index: {}]
  %s2 = inlined_call_operand.vmem [shape: f32[1,32], index: 2, kind: input, shape index: {}]
  %s3 = inlined_call_operand.hbm [shape: f32[8,32], index: 3, kind: output, shape index: {}]
  %s4 = sld [smem:[#allocation0]]
  $region30: #{tpu_custom_call.1} parent=0
    _
  %s6 = ssub.s32 1, %s4
  %s7 = scalar_select 0, %s6, %s4
  $region1: #{tpu_custom_call.1} parent=0
    #allocation2 [shape = 'u8[65536]{0}', space=vmem, size = 0x10000, scoped, tag = 'input window, operand 0, single buffered']
    #allocation3 [shape = 's32[1]{0}', space=sflag, size = 0x4, scoped, tag = 'scoped memory for tpu_custom_call.1']
    #allocation4 [shape = 's32[1]{0}', space=sflag, size = 0x4, scoped, tag = 'scoped memory for tpu_custom_call.1']
    #allocation5 [shape = 'u8[16384]{0}', space=vmem, size = 0x4000, scoped, tag = 'input window, operand 1, single buffered']
    #allocation6 [shape = 's32[1]{0}', space=sflag, size = 0x4, scoped, tag = 'scoped memory for tpu_custom_call.1']
    #allocation7 [shape = 'u8[4096]{0}', space=vmem, size = 0x1000, scoped, tag = 'output window, operand 0, single buffered']
    %8 = vsyncpa [#allocation3], 0
    %9 = vsyncpa [#allocation6], 0
    %10 = vsyncpa [#allocation4], 0
    // Predicated region
    $region2: #{tpu_custom_call.1} parent=1 // pred_check
      _
    $region3: #{tpu_custom_call.1} parent=1 // pred_check_branch
      %12 = sbr.rel (0) target = $region5
    $region4: #{tpu_custom_call.1} parent=1 // pred_region
      %s14 = ssub.s32 2048, 2048
      %15 = vsyncadd [#allocation3], %s14
      %s16 = sshll.u32 [#allocation2], 4
      %s17 = int_to_ptr.vmem [resolvable:$true] %s16
      %22 = dma.hbm_to_vmem [thread:$0]  %s0, 2048, %s17, [#allocation3], 128, 128, 8
    $region5: #{tpu_custom_call.1} parent=1 // pred_fallthru
      _
    // Predicated region
    $region6: #{tpu_custom_call.1} parent=1 // pred_check
      _
    $region7: #{tpu_custom_call.1} parent=1 // pred_check_branch
      %24 = sbr.rel (0) target = $region9
    $region8: #{tpu_custom_call.1} parent=1 // pred_region
      %s26 = ssub.s32 512, 512
      %27 = vsyncadd [#allocation6], %s26
      %s28 = sshll.u32 [#allocation5], 4
      %s29 = int_to_ptr.vmem [resolvable:$true] %s28
      %34 = dma.hbm_to_vmem [thread:$0]  %s1, 512, %s29, [#allocation6], 128, 128, 8
    $region9: #{tpu_custom_call.1} parent=1 // pred_fallthru
      _
    // Predicated region
    $region10: #{tpu_custom_call.1} parent=1 // pred_check
      _
    $region11: #{tpu_custom_call.1} parent=1 // pred_check_branch
      %36 = sbr.rel (0) target = $region13
    $region12: #{tpu_custom_call.1} parent=1 // pred_region
      _
    $region13: #{tpu_custom_call.1} parent=1 // pred_fallthru
      _
    // Predicated region
    $region14: #{tpu_custom_call.1} parent=1 // pred_check
      _
    $region15: #{tpu_custom_call.1} parent=1 // pred_check_branch
      %38 = sbr.rel (0) target = $region17
    $region16: #{tpu_custom_call.1} parent=1 // pred_region
      %39 = dma.done [#allocation3], 2048
    $region17: #{tpu_custom_call.1} parent=1 // pred_fallthru
      _
    // Predicated region
    $region18: #{tpu_custom_call.1} parent=1 // pred_check
      _
    $region19: #{tpu_custom_call.1} parent=1 // pred_check_branch
      %41 = sbr.rel (0) target = $region21
    $region20: #{tpu_custom_call.1} parent=1 // pred_region
      %42 = dma.done [#allocation6], 512
    $region21: #{tpu_custom_call.1} parent=1 // pred_fallthru
      _
    %v43 = vld [vmem:[#allocation2] sm:$0xff]
    %v44 = vld [vmem:[#allocation2 + $0x8] sm:$0xff]
    %v45 = vld [vmem:[#allocation2 + $0x10] sm:$0xff]
    %v46 = vld [vmem:[#allocation2 + $0x18] sm:$0xff]
    %v47 = vld [vmem:[#allocation2 + $0x20] sm:$0xff]
    %v48 = vld [vmem:[#allocation2 + $0x28] sm:$0xff]
    %v49 = vld [vmem:[#allocation2 + $0x30] sm:$0xff]
    %v50 = vld [vmem:[#allocation2 + $0x38] sm:$0xff]
    %v51 = vld [vmem:[#allocation2 + $0x40] sm:$0xff]
    %v52 = vld [vmem:[#allocation2 + $0x48] sm:$0xff]
    %v53 = vld [vmem:[#allocation2 + $0x50] sm:$0xff]
    %v54 = vld [vmem:[#allocation2 + $0x58] sm:$0xff]
    %v55 = vld [vmem:[#allocation2 + $0x60] sm:$0xff]
    %v56 = vld [vmem:[#allocation2 + $0x68] sm:$0xff]
    %v57 = vld [vmem:[#allocation2 + $0x70] sm:$0xff]
    %v58 = vld [vmem:[#allocation2 + $0x78] sm:$0xff]
    %v59 = vld [vmem:[#allocation5] sm:$0xff]
    %v60 = vld [vmem:[#allocation5 + $0x8] sm:$0xff]
    %v61 = vld [vmem:[#allocation5 + $0x10] sm:$0xff]
    %v62 = vld [vmem:[#allocation5 + $0x18] sm:$0xff]
    %vm63 = vcmask 261120
    %v65 = vsel %vm63, %v43, 0
    %v68 = vsel %vm63, %v44, 0
    %v71 = vsel %vm63, %v45, 0
    %v74 = vsel %vm63, %v46, 0
    %v77 = vsel %vm63, %v47, 0
    %v80 = vsel %vm63, %v48, 0
    %v83 = vsel %vm63, %v49, 0
    %v86 = vsel %vm63, %v50, 0
    %v89 = vsel %vm63, %v51, 0
    %v92 = vsel %vm63, %v52, 0
    %v95 = vsel %vm63, %v53, 0
    %v98 = vsel %vm63, %v54, 0
    %v101 = vsel %vm63, %v55, 0
    %v104 = vsel %vm63, %v56, 0
    %v107 = vsel %vm63, %v57, 0
    %v110 = vsel %vm63, %v58, 0
    %112 = vmatprep.subr.mxu0 0.0
    %113 = vmatpush1.msra.mxu0 0.0
    %114 = vmatprep.subr.mxu0 0.0
    %115 = vmatpush1.msra.mxu0 0.0
    %116 = vmatprep.subr.mxu0 0.0
    %117 = vmatpush1.msra.mxu0 0.0
    %118 = vmatprep.subr.mxu0 0.0
    %119 = vmatpush1.msra.mxu0 0.0
    %120 = vmatprep.subr.mxu0 0.0
    %121 = vmatpush1.msra.mxu0 0.0
    %122 = vmatprep.subr.mxu0 0.0
    %123 = vmatpush1.msra.mxu0 0.0
    %124 = vmatprep.subr.mxu0 0.0
    %125 = vmatpush1.msra.mxu0 0.0
    %126 = vmatprep.subr.mxu0 0.0
    %127 = vmatpush1.msra.mxu0 0.0
    %128 = vmatprep.subr.mxu0 0.0
    %129 = vmatpush1.msra.mxu0 0.0
    %130 = vmatprep.subr.mxu0 0.0
    %131 = vmatpush1.msra.mxu0 0.0
    %132 = vmatprep.subr.mxu0 0.0
    %133 = vmatpush1.msra.mxu0 0.0
    %134 = vmatprep.subr.mxu0 0.0
    %135 = vmatpush1.msra.mxu0 0.0
    %136 = vmatprep.subr.mxu0 0.0
    %137 = vmatpush1.msra.mxu0 %v62
    %138 = vmatprep.subr.mxu0 0.0
    %139 = vmatpush1.msra.mxu0 %v61
    %140 = vmatprep.subr.mxu0 0.0
    %141 = vmatpush1.msra.mxu0 %v60
    %142 = vmatprep.subr.mxu0 0.0
    %143 = vmatpush1.msra.mxu0 %v59
    %144 = vmatprep.subr.mxu0 0.0
    %145 = vmatpush2.msra.mxu0 0.0
    %146 = vmatprep.subr.mxu0 0.0
    %147 = vmatpush2.msra.mxu0 0.0
    %148 = vmatprep.subr.mxu0 0.0
    %149 = vmatpush2.msra.mxu0 0.0
    %150 = vmatprep.subr.mxu0 0.0
    %151 = vmatpush2.msra.mxu0 0.0
    %152 = vmatprep.subr.mxu0 0.0
    %153 = vmatpush2.msra.mxu0 0.0
    %154 = vmatprep.subr.mxu0 0.0
    %155 = vmatpush2.msra.mxu0 0.0
    %156 = vmatprep.subr.mxu0 0.0
    %157 = vmatpush2.msra.mxu0 0.0
    %158 = vmatprep.subr.mxu0 0.0
    %159 = vmatpush2.msra.mxu0 0.0
    %160 = vmatprep.subr.mxu0 0.0
    %161 = vmatpush2.msra.mxu0 0.0
    %162 = vmatprep.subr.mxu0 0.0
    %163 = vmatpush2.msra.mxu0 0.0
    %164 = vmatprep.subr.mxu0 0.0
    %165 = vmatpush2.msra.mxu0 0.0
    %166 = vmatprep.subr.mxu0 0.0
    %167 = vmatpush2.msra.mxu0 0.0
    %168 = vmatprep.subr.mxu0 0.0
    %169 = vmatpush2.msra.mxu0 0.0
    %170 = vmatprep.subr.mxu0 0.0
    %171 = vmatpush2.msra.mxu0 0.0
    %172 = vmatprep.subr.mxu0 0.0
    %173 = vmatpush2.msra.mxu0 0.0
    %174 = vmatprep.subr.mxu0 0.0
    %175 = vmatpush2.msra.mxu0 0.0
    %176 = vmatprep.mubr.f32.mxu0 0.0
    %177 = vmatmul.mubr.f32.gmra.mxu0 %v65
    %v178 = vpop.f32.mrf.mxu0
    %v179 = vadd.f32 0.0, %v178
    %v180 = vpop.f32.mrf.mxu0
    %181 = vmatprep.mubr.f32.mxu0 0.0
    %182 = vmatmul.mubr.f32.gmra.mxu0 %v68
    %v183 = vpop.f32.mrf.mxu0
    %v184 = vadd.f32 0.0, %v183
    %v185 = vpop.f32.mrf.mxu0
    %186 = vmatprep.mubr.f32.mxu0 0.0
    %187 = vmatmul.mubr.f32.gmra.mxu0 %v71
    %v188 = vpop.f32.mrf.mxu0
    %v189 = vadd.f32 0.0, %v188
    %v190 = vpop.f32.mrf.mxu0
    %191 = vmatprep.mubr.f32.mxu0 0.0
    %192 = vmatmul.mubr.f32.gmra.mxu0 %v74
    %v193 = vpop.f32.mrf.mxu0
    %v194 = vadd.f32 0.0, %v193
    %v195 = vpop.f32.mrf.mxu0
    %196 = vmatprep.mubr.f32.mxu0 0.0
    %197 = vmatmul.mubr.f32.gmra.mxu0 %v77
    %v198 = vpop.f32.mrf.mxu0
    %v199 = vadd.f32 0.0, %v198
    %v200 = vpop.f32.mrf.mxu0
    %201 = vmatprep.mubr.f32.mxu0 0.0
    %202 = vmatmul.mubr.f32.gmra.mxu0 %v80
    %v203 = vpop.f32.mrf.mxu0
    %v204 = vadd.f32 0.0, %v203
    %v205 = vpop.f32.mrf.mxu0
    %206 = vmatprep.mubr.f32.mxu0 0.0
    %207 = vmatmul.mubr.f32.gmra.mxu0 %v83
    %v208 = vpop.f32.mrf.mxu0
    %v209 = vadd.f32 0.0, %v208
    %v210 = vpop.f32.mrf.mxu0
    %211 = vmatprep.mubr.f32.mxu0 0.0
    %212 = vmatmul.mubr.f32.gmra.mxu0 %v86
    %v213 = vpop.f32.mrf.mxu0
    %v214 = vadd.f32 0.0, %v213
    %v215 = vpop.f32.mrf.mxu0
    %216 = vmatprep.mubr.f32.mxu0 0.0
    %217 = vmatmul.mubr.f32.gmra.mxu0 %v89
    %v218 = vpop.f32.mrf.mxu0
    %v219 = vadd.f32 0.0, %v218
    %v220 = vpop.f32.mrf.mxu0
    %221 = vmatprep.mubr.f32.mxu0 0.0
    %222 = vmatmul.mubr.f32.gmra.mxu0 %v92
    %v223 = vpop.f32.mrf.mxu0
    %v224 = vadd.f32 0.0, %v223
    %v225 = vpop.f32.mrf.mxu0
    %226 = vmatprep.mubr.f32.mxu0 0.0
    %227 = vmatmul.mubr.f32.gmra.mxu0 %v95
    %v228 = vpop.f32.mrf.mxu0
    %v229 = vadd.f32 0.0, %v228
    %v230 = vpop.f32.mrf.mxu0
    %231 = vmatprep.mubr.f32.mxu0 0.0
    %232 = vmatmul.mubr.f32.gmra.mxu0 %v98
    %v233 = vpop.f32.mrf.mxu0
    %v234 = vadd.f32 0.0, %v233
    %v235 = vpop.f32.mrf.mxu0
    %236 = vmatprep.mubr.f32.mxu0 0.0
    %237 = vmatmul.mubr.f32.gmra.mxu0 %v101
    %v238 = vpop.f32.mrf.mxu0
    %v239 = vadd.f32 0.0, %v238
    %v240 = vpop.f32.mrf.mxu0
    %241 = vmatprep.mubr.f32.mxu0 0.0
    %242 = vmatmul.mubr.f32.gmra.mxu0 %v104
    %v243 = vpop.f32.mrf.mxu0
    %v244 = vadd.f32 0.0, %v243
    %v245 = vpop.f32.mrf.mxu0
    %246 = vmatprep.mubr.f32.mxu0 0.0
    %247 = vmatmul.mubr.f32.gmra.mxu0 %v107
    %v248 = vpop.f32.mrf.mxu0
    %v249 = vadd.f32 0.0, %v248
    %v250 = vpop.f32.mrf.mxu0
    %251 = vmatprep.mubr.f32.mxu0 0.0
    %252 = vmatmul.mubr.f32.gmra.mxu0 %v110
    %v253 = vpop.f32.mrf.mxu0
    %v254 = vadd.f32 0.0, %v253
    %v255 = vpop.f32.mrf.mxu0
    %256 = vdwg.mxu0
    %v257 = vlaneseq
    %v258 = vshrl.u32 %v257, 7
    %v259 = vadd.s32 %v258, 8
    %v260 = vadd.s32 %v258, 16
    %v261 = vadd.s32 %v258, 24
    %v262 = vadd.s32 %v258, 32
    %v263 = vadd.s32 %v258, 40
    %v264 = vadd.s32 %v258, 48
    %v265 = vadd.s32 %v258, 56
    %v266 = vadd.s32 %v258, 64
    %v267 = vadd.s32 %v258, 72
    %v268 = vadd.s32 %v258, 80
    %v269 = vadd.s32 %v258, 88
    %v270 = vadd.s32 %v258, 96
    %v271 = vadd.s32 %v258, 104
    %v272 = vadd.s32 %v258, 112
    %v273 = vadd.s32 %v258, 120
    %vm274 = vcmp.lt.s32.totalorder %v258, 0
    %v275 = vsub.s32 0, %v258
    %v276 = vsel %vm274, %v275, %v258
    %v277 = vshrl.u32 %v276, 4
    %v278 = vand.u32 %v276, 15
    %v279 = vsub.s32 0, %v278
    %v280 = vsel %vm274, %v279, %v278
    %vm281 = vcmp.lt.s32.totalorder %v259, 0
    %v282 = vsub.s32 0, %v259
    %v283 = vsel %vm281, %v282, %v259
    %v284 = vshrl.u32 %v283, 4
    %v285 = vand.u32 %v283, 15
    %v286 = vsub.s32 0, %v285
    %v287 = vsel %vm281, %v286, %v285
    %vm288 = vcmp.lt.s32.totalorder %v260, 0
    %v289 = vsub.s32 0, %v260
    %v290 = vsel %vm288, %v289, %v260
    %v291 = vshrl.u32 %v290, 4
    %v292 = vand.u32 %v290, 15
    %v293 = vsub.s32 0, %v292
    %v294 = vsel %vm288, %v293, %v292
    %vm295 = vcmp.lt.s32.totalorder %v261, 0
    %v296 = vsub.s32 0, %v261
    %v297 = vsel %vm295, %v296, %v261
    %v298 = vshrl.u32 %v297, 4
    %v299 = vand.u32 %v297, 15
    %v300 = vsub.s32 0, %v299
    %v301 = vsel %vm295, %v300, %v299
    %vm302 = vcmp.lt.s32.totalorder %v262, 0
    %v303 = vsub.s32 0, %v262
    %v304 = vsel %vm302, %v303, %v262
    %v305 = vshrl.u32 %v304, 4
    %v306 = vand.u32 %v304, 15
    %v307 = vsub.s32 0, %v306
    %v308 = vsel %vm302, %v307, %v306
    %vm309 = vcmp.lt.s32.totalorder %v263, 0
    %v310 = vsub.s32 0, %v263
    %v311 = vsel %vm309, %v310, %v263
    %v312 = vshrl.u32 %v311, 4
    %v313 = vand.u32 %v311, 15
    %v314 = vsub.s32 0, %v313
    %v315 = vsel %vm309, %v314, %v313
    %vm316 = vcmp.lt.s32.totalorder %v264, 0
    %v317 = vsub.s32 0, %v264
    %v318 = vsel %vm316, %v317, %v264
    %v319 = vshrl.u32 %v318, 4
    %v320 = vand.u32 %v318, 15
    %v321 = vsub.s32 0, %v320
    %v322 = vsel %vm316, %v321, %v320
    %vm323 = vcmp.lt.s32.totalorder %v265, 0
    %v324 = vsub.s32 0, %v265
    %v325 = vsel %vm323, %v324, %v265
    %v326 = vshrl.u32 %v325, 4
    %v327 = vand.u32 %v325, 15
    %v328 = vsub.s32 0, %v327
    %v329 = vsel %vm323, %v328, %v327
    %vm330 = vcmp.lt.s32.totalorder %v266, 0
    %v331 = vsub.s32 0, %v266
    %v332 = vsel %vm330, %v331, %v266
    %v333 = vshrl.u32 %v332, 4
    %v334 = vand.u32 %v332, 15
    %v335 = vsub.s32 0, %v334
    %v336 = vsel %vm330, %v335, %v334
    %vm337 = vcmp.lt.s32.totalorder %v267, 0
    %v338 = vsub.s32 0, %v267
    %v339 = vsel %vm337, %v338, %v267
    %v340 = vshrl.u32 %v339, 4
    %v341 = vand.u32 %v339, 15
    %v342 = vsub.s32 0, %v341
    %v343 = vsel %vm337, %v342, %v341
    %vm344 = vcmp.lt.s32.totalorder %v268, 0
    %v345 = vsub.s32 0, %v268
    %v346 = vsel %vm344, %v345, %v268
    %v347 = vshrl.u32 %v346, 4
    %v348 = vand.u32 %v346, 15
    %v349 = vsub.s32 0, %v348
    %v350 = vsel %vm344, %v349, %v348
    %vm351 = vcmp.lt.s32.totalorder %v269, 0
    %v352 = vsub.s32 0, %v269
    %v353 = vsel %vm351, %v352, %v269
    %v354 = vshrl.u32 %v353, 4
    %v355 = vand.u32 %v353, 15
    %v356 = vsub.s32 0, %v355
    %v357 = vsel %vm351, %v356, %v355
    %vm358 = vcmp.lt.s32.totalorder %v270, 0
    %v359 = vsub.s32 0, %v270
    %v360 = vsel %vm358, %v359, %v270
    %v361 = vshrl.u32 %v360, 4
    %v362 = vand.u32 %v360, 15
    %v363 = vsub.s32 0, %v362
    %v364 = vsel %vm358, %v363, %v362
    %vm365 = vcmp.lt.s32.totalorder %v271, 0
    %v366 = vsub.s32 0, %v271
    %v367 = vsel %vm365, %v366, %v271
    %v368 = vshrl.u32 %v367, 4
    %v369 = vand.u32 %v367, 15
    %v370 = vsub.s32 0, %v369
    %v371 = vsel %vm365, %v370, %v369
    %vm372 = vcmp.lt.s32.totalorder %v272, 0
    %v373 = vsub.s32 0, %v272
    %v374 = vsel %vm372, %v373, %v272
    %v375 = vshrl.u32 %v374, 4
    %v376 = vand.u32 %v374, 15
    %v377 = vsub.s32 0, %v376
    %v378 = vsel %vm372, %v377, %v376
    %vm379 = vcmp.lt.s32.totalorder %v273, 0
    %v380 = vsub.s32 0, %v273
    %v381 = vsel %vm379, %v380, %v273
    %v382 = vshrl.u32 %v381, 4
    %v383 = vand.u32 %v381, 15
    %v384 = vsub.s32 0, %v383
    %v385 = vsel %vm379, %v384, %v383
    %vm386 = vcmp.ne.s32.totalorder %v280, 0
    %vm387 = vcmp.ne.s32.totalorder %v287, 0
    %vm388 = vcmp.ne.s32.totalorder %v294, 0
    %vm389 = vcmp.ne.s32.totalorder %v301, 0
    %vm390 = vcmp.ne.s32.totalorder %v308, 0
    %vm391 = vcmp.ne.s32.totalorder %v315, 0
    %vm392 = vcmp.ne.s32.totalorder %v322, 0
    %vm393 = vcmp.ne.s32.totalorder %v329, 0
    %vm394 = vcmp.ne.s32.totalorder %v336, 0
    %vm395 = vcmp.ne.s32.totalorder %v343, 0
    %vm396 = vcmp.ne.s32.totalorder %v350, 0
    %vm397 = vcmp.ne.s32.totalorder %v357, 0
    %vm398 = vcmp.ne.s32.totalorder %v364, 0
    %vm399 = vcmp.ne.s32.totalorder %v371, 0
    %vm400 = vcmp.ne.s32.totalorder %v378, 0
    %vm401 = vcmp.ne.s32.totalorder %v385, 0
    %vm402 = vcmp.lt.s32.totalorder %v280, 0
    %vm403 = vcmp.lt.s32.totalorder %v287, 0
    %vm404 = vcmp.lt.s32.totalorder %v294, 0
    %vm405 = vcmp.lt.s32.totalorder %v301, 0
    %vm406 = vcmp.lt.s32.totalorder %v308, 0
    %vm407 = vcmp.lt.s32.totalorder %v315, 0
    %vm408 = vcmp.lt.s32.totalorder %v322, 0
    %vm409 = vcmp.lt.s32.totalorder %v329, 0
    %vm410 = vcmp.lt.s32.totalorder %v336, 0
    %vm411 = vcmp.lt.s32.totalorder %v343, 0
    %vm412 = vcmp.lt.s32.totalorder %v350, 0
    %vm413 = vcmp.lt.s32.totalorder %v357, 0
    %vm414 = vcmp.lt.s32.totalorder %v364, 0
    %vm415 = vcmp.lt.s32.totalorder %v371, 0
    %vm416 = vcmp.lt.s32.totalorder %v378, 0
    %vm417 = vcmp.lt.s32.totalorder %v385, 0
    %vm418 = vmand %vm402, %vm386
    %vm419 = vmand %vm403, %vm387
    %vm420 = vmand %vm404, %vm388
    %vm421 = vmand %vm405, %vm389
    %vm422 = vmand %vm406, %vm390
    %vm423 = vmand %vm407, %vm391
    %vm424 = vmand %vm408, %vm392
    %vm425 = vmand %vm409, %vm393
    %vm426 = vmand %vm410, %vm394
    %vm427 = vmand %vm411, %vm395
    %vm428 = vmand %vm412, %vm396
    %vm429 = vmand %vm413, %vm397
    %vm430 = vmand %vm414, %vm398
    %vm431 = vmand %vm415, %vm399
    %vm432 = vmand %vm416, %vm400
    %vm433 = vmand %vm417, %vm401
    %v434 = vadd.s32 %v280, 16
    %v435 = vadd.s32 %v287, 16
    %v436 = vadd.s32 %v294, 16
    %v437 = vadd.s32 %v301, 16
    %v438 = vadd.s32 %v308, 16
    %v439 = vadd.s32 %v315, 16
    %v440 = vadd.s32 %v322, 16
    %v441 = vadd.s32 %v329, 16
    %v442 = vadd.s32 %v336, 16
    %v443 = vadd.s32 %v343, 16
    %v444 = vadd.s32 %v350, 16
    %v445 = vadd.s32 %v357, 16
    %v446 = vadd.s32 %v364, 16
    %v447 = vadd.s32 %v371, 16
    %v448 = vadd.s32 %v378, 16
    %v449 = vadd.s32 %v385, 16
    %v450 = vsel %vm418, %v434, %v280
    %v451 = vsel %vm419, %v435, %v287
    %v452 = vsel %vm420, %v436, %v294
    %v453 = vsel %vm421, %v437, %v301
    %v454 = vsel %vm422, %v438, %v308
    %v455 = vsel %vm423, %v439, %v315
    %v456 = vsel %vm424, %v440, %v322
    %v457 = vsel %vm425, %v441, %v329
    %v458 = vsel %vm426, %v442, %v336
    %v459 = vsel %vm427, %v443, %v343
    %v460 = vsel %vm428, %v444, %v350
    %v461 = vsel %vm429, %v445, %v357
    %v462 = vsel %vm430, %v446, %v364
    %v463 = vsel %vm431, %v447, %v371
    %v464 = vsel %vm432, %v448, %v378
    %v465 = vsel %vm433, %v449, %v385
    %vm466 = vcmp.eq.s32.totalorder %v450, 0
    %vm467 = vcmp.eq.s32.totalorder %v451, 0
    %vm468 = vcmp.eq.s32.totalorder %v452, 0
    %vm469 = vcmp.eq.s32.totalorder %v453, 0
    %vm470 = vcmp.eq.s32.totalorder %v454, 0
    %vm471 = vcmp.eq.s32.totalorder %v455, 0
    %vm472 = vcmp.eq.s32.totalorder %v456, 0
    %vm473 = vcmp.eq.s32.totalorder %v457, 0
    %vm474 = vcmp.eq.s32.totalorder %v458, 0
    %vm475 = vcmp.eq.s32.totalorder %v459, 0
    %vm476 = vcmp.eq.s32.totalorder %v460, 0
    %vm477 = vcmp.eq.s32.totalorder %v461, 0
    %vm478 = vcmp.eq.s32.totalorder %v462, 0
    %vm479 = vcmp.eq.s32.totalorder %v463, 0
    %vm480 = vcmp.eq.s32.totalorder %v464, 0
    %vm481 = vcmp.eq.s32.totalorder %v465, 0
    %v482 = vrot.slane %v179, 7
    %v483 = vrot.slane %v184, 7
    %v484 = vrot.slane %v189, 7
    %v485 = vrot.slane %v194, 7
    %v486 = vrot.slane %v199, 7
    %v487 = vrot.slane %v204, 7
    %v488 = vrot.slane %v209, 7
    %v489 = vrot.slane %v214, 7
    %v490 = vrot.slane %v219, 7
    %v491 = vrot.slane %v224, 7
    %v492 = vrot.slane %v229, 7
    %v493 = vrot.slane %v234, 7
    %v494 = vrot.slane %v239, 7
    %v495 = vrot.slane %v244, 7
    %v496 = vrot.slane %v249, 7
    %v497 = vrot.slane %v254, 7
    %vm498 = vcmp.lt.s32.totalorder %v258, 1
    %v499 = vsel %vm498, %v496, %v497
    %v500 = vsel %vm498, %v495, %v496
    %v501 = vsel %vm498, %v494, %v495
    %v502 = vsel %vm498, %v493, %v494
    %v503 = vsel %vm498, %v492, %v493
    %v504 = vsel %vm498, %v491, %v492
    %v505 = vsel %vm498, %v490, %v491
    %v506 = vsel %vm498, %v489, %v490
    %v507 = vsel %vm498, %v488, %v489
    %v508 = vsel %vm498, %v487, %v488
    %v509 = vsel %vm498, %v486, %v487
    %v510 = vsel %vm498, %v485, %v486
    %v511 = vsel %vm498, %v484, %v485
    %v512 = vsel %vm498, %v483, %v484
    %v513 = vsel %vm498, %v482, %v483
    %v514 = vsel %vm498, %v497, %v482
    %v515 = vsel %vm466, 1, 0
    %v516 = vsel %vm467, 1, 0
    %v517 = vsel %vm468, 1, 0
    %v518 = vsel %vm469, 1, 0
    %v519 = vsel %vm470, 1, 0
    %v520 = vsel %vm471, 1, 0
    %v521 = vsel %vm472, 1, 0
    %v522 = vsel %vm473, 1, 0
    %v523 = vsel %vm474, 1, 0
    %v524 = vsel %vm475, 1, 0
    %v525 = vsel %vm476, 1, 0
    %v526 = vsel %vm477, 1, 0
    %v527 = vsel %vm478, 1, 0
    %v528 = vsel %vm479, 1, 0
    %v529 = vsel %vm480, 1, 0
    %v530 = vsel %vm481, 1, 0
    %vm531 = vcmp.eq.s32.totalorder %v515, 1
    %vm532 = vcmp.eq.s32.totalorder %v516, 1
    %vm533 = vcmp.eq.s32.totalorder %v517, 1
    %vm534 = vcmp.eq.s32.totalorder %v518, 1
    %vm535 = vcmp.eq.s32.totalorder %v519, 1
    %vm536 = vcmp.eq.s32.totalorder %v520, 1
    %vm537 = vcmp.eq.s32.totalorder %v521, 1
    %vm538 = vcmp.eq.s32.totalorder %v522, 1
    %vm539 = vcmp.eq.s32.totalorder %v523, 1
    %vm540 = vcmp.eq.s32.totalorder %v524, 1
    %vm541 = vcmp.eq.s32.totalorder %v525, 1
    %vm542 = vcmp.eq.s32.totalorder %v526, 1
    %vm543 = vcmp.eq.s32.totalorder %v527, 1
    %vm544 = vcmp.eq.s32.totalorder %v528, 1
    %vm545 = vcmp.eq.s32.totalorder %v529, 1
    %vm546 = vcmp.eq.s32.totalorder %v530, 1
    %v547 = vsel %vm531, 0.0, %v514
    %v548 = vsel %vm532, 0.0, %v513
    %v549 = vsel %vm533, 0.0, %v512
    %v550 = vsel %vm534, 0.0, %v511
    %v551 = vsel %vm535, 0.0, %v510
    %v552 = vsel %vm536, 0.0, %v509
    %v553 = vsel %vm537, 0.0, %v508
    %v554 = vsel %vm538, 0.0, %v507
    %v555 = vsel %vm539, 0.0, %v506
    %v556 = vsel %vm540, 0.0, %v505
    %v557 = vsel %vm541, 0.0, %v504
    %v558 = vsel %vm542, 0.0, %v503
    %v559 = vsel %vm543, 0.0, %v502
    %v560 = vsel %vm544, 0.0, %v501
    %v561 = vsel %vm545, 0.0, %v500
    %v562 = vsel %vm546, 0.0, %v499
    %579 = vrot.lane.b32.xlu0 %v547, 32
    %v580 = vpop.permute.xlu0 %579
    %581 = vrot.lane.b32.xlu0 %v548, 32
    %v582 = vpop.permute.xlu0 %581
    %583 = vrot.lane.b32.xlu0 %v549, 32
    %v584 = vpop.permute.xlu0 %583
    %585 = vrot.lane.b32.xlu0 %v550, 32
    %v586 = vpop.permute.xlu0 %585
    %587 = vrot.lane.b32.xlu0 %v551, 32
    %v588 = vpop.permute.xlu0 %587
    %589 = vrot.lane.b32.xlu0 %v552, 32
    %v590 = vpop.permute.xlu0 %589
    %591 = vrot.lane.b32.xlu0 %v553, 32
    %v592 = vpop.permute.xlu0 %591
    %593 = vrot.lane.b32.xlu0 %v554, 32
    %v594 = vpop.permute.xlu0 %593
    %595 = vrot.lane.b32.xlu0 %v555, 32
    %v596 = vpop.permute.xlu0 %595
    %597 = vrot.lane.b32.xlu0 %v556, 32
    %v598 = vpop.permute.xlu0 %597
    %599 = vrot.lane.b32.xlu0 %v557, 32
    %v600 = vpop.permute.xlu0 %599
    %601 = vrot.lane.b32.xlu0 %v558, 32
    %v602 = vpop.permute.xlu0 %601
    %603 = vrot.lane.b32.xlu0 %v559, 32
    %v604 = vpop.permute.xlu0 %603
    %605 = vrot.lane.b32.xlu0 %v560, 32
    %v606 = vpop.permute.xlu0 %605
    %607 = vrot.lane.b32.xlu0 %v561, 32
    %v608 = vpop.permute.xlu0 %607
    %609 = vrot.lane.b32.xlu0 %v562, 32
    %v610 = vpop.permute.xlu0 %609
    %v627 = vadd.f32 %v179, %v580
    %v628 = vadd.f32 %v184, %v582
    %v629 = vadd.f32 %v189, %v584
    %v630 = vadd.f32 %v194, %v586
    %v631 = vadd.f32 %v199, %v588
    %v632 = vadd.f32 %v204, %v590
    %v633 = vadd.f32 %v209, %v592
    %v634 = vadd.f32 %v214, %v594
    %v635 = vadd.f32 %v219, %v596
    %v636 = vadd.f32 %v224, %v598
    %v637 = vadd.f32 %v229, %v600
    %v638 = vadd.f32 %v234, %v602
    %v639 = vadd.f32 %v239, %v604
    %v640 = vadd.f32 %v244, %v606
    %v641 = vadd.f32 %v249, %v608
    %v642 = vadd.f32 %v254, %v610
    %vm643 = vcmp.eq.s32.totalorder %v450, 15
    %vm644 = vcmp.eq.s32.totalorder %v451, 15
    %vm645 = vcmp.eq.s32.totalorder %v452, 15
    %vm646 = vcmp.eq.s32.totalorder %v453, 15
    %vm647 = vcmp.eq.s32.totalorder %v454, 15
    %vm648 = vcmp.eq.s32.totalorder %v455, 15
    %vm649 = vcmp.eq.s32.totalorder %v456, 15
    %vm650 = vcmp.eq.s32.totalorder %v457, 15
    %vm651 = vcmp.eq.s32.totalorder %v458, 15
    %vm652 = vcmp.eq.s32.totalorder %v459, 15
    %vm653 = vcmp.eq.s32.totalorder %v460, 15
    %vm654 = vcmp.eq.s32.totalorder %v461, 15
    %vm655 = vcmp.eq.s32.totalorder %v462, 15
    %vm656 = vcmp.eq.s32.totalorder %v463, 15
    %vm657 = vcmp.eq.s32.totalorder %v464, 15
    %vm658 = vcmp.eq.s32.totalorder %v465, 15
    %675 = vrot.lane.b32.xlu0 %v179, 64
    %v676 = vpop.permute.xlu0 %675
    %677 = vrot.lane.b32.xlu0 %v184, 64
    %v678 = vpop.permute.xlu0 %677
    %679 = vrot.lane.b32.xlu0 %v189, 64
    %v680 = vpop.permute.xlu0 %679
    %681 = vrot.lane.b32.xlu0 %v194, 64
    %v682 = vpop.permute.xlu0 %681
    %683 = vrot.lane.b32.xlu0 %v199, 64
    %v684 = vpop.permute.xlu0 %683
    %685 = vrot.lane.b32.xlu0 %v204, 64
    %v686 = vpop.permute.xlu0 %685
    %687 = vrot.lane.b32.xlu0 %v209, 64
    %v688 = vpop.permute.xlu0 %687
    %689 = vrot.lane.b32.xlu0 %v214, 64
    %v690 = vpop.permute.xlu0 %689
    %691 = vrot.lane.b32.xlu0 %v219, 64
    %v692 = vpop.permute.xlu0 %691
    %693 = vrot.lane.b32.xlu0 %v224, 64
    %v694 = vpop.permute.xlu0 %693
    %695 = vrot.lane.b32.xlu0 %v229, 64
    %v696 = vpop.permute.xlu0 %695
    %697 = vrot.lane.b32.xlu0 %v234, 64
    %v698 = vpop.permute.xlu0 %697
    %699 = vrot.lane.b32.xlu0 %v239, 64
    %v700 = vpop.permute.xlu0 %699
    %701 = vrot.lane.b32.xlu0 %v244, 64
    %v702 = vpop.permute.xlu0 %701
    %703 = vrot.lane.b32.xlu0 %v249, 64
    %v704 = vpop.permute.xlu0 %703
    %705 = vrot.lane.b32.xlu0 %v254, 64
    %v706 = vpop.permute.xlu0 %705
    %v723 = vrot.slane %v676, 1
    %v724 = vrot.slane %v678, 1
    %v725 = vrot.slane %v680, 1
    %v726 = vrot.slane %v682, 1
    %v727 = vrot.slane %v684, 1
    %v728 = vrot.slane %v686, 1
    %v729 = vrot.slane %v688, 1
    %v730 = vrot.slane %v690, 1
    %v731 = vrot.slane %v692, 1
    %v732 = vrot.slane %v694, 1
    %v733 = vrot.slane %v696, 1
    %v734 = vrot.slane %v698, 1
    %v735 = vrot.slane %v700, 1
    %v736 = vrot.slane %v702, 1
    %v737 = vrot.slane %v704, 1
    %v738 = vrot.slane %v706, 1
    %vm739 = vcmp.lt.s32.totalorder %v258, 7
    %v740 = vsel %vm739, %v737, %v738
    %v741 = vsel %vm739, %v736, %v737
    %v742 = vsel %vm739, %v735, %v736
    %v743 = vsel %vm739, %v734, %v735
    %v744 = vsel %vm739, %v733, %v734
    %v745 = vsel %vm739, %v732, %v733
    %v746 = vsel %vm739, %v731, %v732
    %v747 = vsel %vm739, %v730, %v731
    %v748 = vsel %vm739, %v729, %v730
    %v749 = vsel %vm739, %v728, %v729
    %v750 = vsel %vm739, %v727, %v728
    %v751 = vsel %vm739, %v726, %v727
    %v752 = vsel %vm739, %v725, %v726
    %v753 = vsel %vm739, %v724, %v725
    %v754 = vsel %vm739, %v723, %v724
    %v755 = vsel %vm739, %v738, %v723
    %v756 = vsel %vm643, 1, 0
    %v757 = vsel %vm644, 1, 0
    %v758 = vsel %vm645, 1, 0
    %v759 = vsel %vm646, 1, 0
    %v760 = vsel %vm647, 1, 0
    %v761 = vsel %vm648, 1, 0
    %v762 = vsel %vm649, 1, 0
    %v763 = vsel %vm650, 1, 0
    %v764 = vsel %vm651, 1, 0
    %v765 = vsel %vm652, 1, 0
    %v766 = vsel %vm653, 1, 0
    %v767 = vsel %vm654, 1, 0
    %v768 = vsel %vm655, 1, 0
    %v769 = vsel %vm656, 1, 0
    %v770 = vsel %vm657, 1, 0
    %v771 = vsel %vm658, 1, 0
    %vm772 = vcmp.eq.s32.totalorder %v756, 1
    %vm773 = vcmp.eq.s32.totalorder %v757, 1
    %vm774 = vcmp.eq.s32.totalorder %v758, 1
    %vm775 = vcmp.eq.s32.totalorder %v759, 1
    %vm776 = vcmp.eq.s32.totalorder %v760, 1
    %vm777 = vcmp.eq.s32.totalorder %v761, 1
    %vm778 = vcmp.eq.s32.totalorder %v762, 1
    %vm779 = vcmp.eq.s32.totalorder %v763, 1
    %vm780 = vcmp.eq.s32.totalorder %v764, 1
    %vm781 = vcmp.eq.s32.totalorder %v765, 1
    %vm782 = vcmp.eq.s32.totalorder %v766, 1
    %vm783 = vcmp.eq.s32.totalorder %v767, 1
    %vm784 = vcmp.eq.s32.totalorder %v768, 1
    %vm785 = vcmp.eq.s32.totalorder %v769, 1
    %vm786 = vcmp.eq.s32.totalorder %v770, 1
    %vm787 = vcmp.eq.s32.totalorder %v771, 1
    %v788 = vsel %vm772, 0.0, %v754
    %v789 = vsel %vm773, 0.0, %v753
    %v790 = vsel %vm774, 0.0, %v752
    %v791 = vsel %vm775, 0.0, %v751
    %v792 = vsel %vm776, 0.0, %v750
    %v793 = vsel %vm777, 0.0, %v749
    %v794 = vsel %vm778, 0.0, %v748
    %v795 = vsel %vm779, 0.0, %v747
    %v796 = vsel %vm780, 0.0, %v746
    %v797 = vsel %vm781, 0.0, %v745
    %v798 = vsel %vm782, 0.0, %v744
    %v799 = vsel %vm783, 0.0, %v743
    %v800 = vsel %vm784, 0.0, %v742
    %v801 = vsel %vm785, 0.0, %v741
    %v802 = vsel %vm786, 0.0, %v740
    %v803 = vsel %vm787, 0.0, %v755
    %820 = vrot.lane.b32.xlu0 %v788, 32
    %v821 = vpop.permute.xlu0 %820
    %822 = vrot.lane.b32.xlu0 %v789, 32
    %v823 = vpop.permute.xlu0 %822
    %824 = vrot.lane.b32.xlu0 %v790, 32
    %v825 = vpop.permute.xlu0 %824
    %826 = vrot.lane.b32.xlu0 %v791, 32
    %v827 = vpop.permute.xlu0 %826
    %828 = vrot.lane.b32.xlu0 %v792, 32
    %v829 = vpop.permute.xlu0 %828
    %830 = vrot.lane.b32.xlu0 %v793, 32
    %v831 = vpop.permute.xlu0 %830
    %832 = vrot.lane.b32.xlu0 %v794, 32
    %v833 = vpop.permute.xlu0 %832
    %834 = vrot.lane.b32.xlu0 %v795, 32
    %v835 = vpop.permute.xlu0 %834
    %836 = vrot.lane.b32.xlu0 %v796, 32
    %v837 = vpop.permute.xlu0 %836
    %838 = vrot.lane.b32.xlu0 %v797, 32
    %v839 = vpop.permute.xlu0 %838
    %840 = vrot.lane.b32.xlu0 %v798, 32
    %v841 = vpop.permute.xlu0 %840
    %842 = vrot.lane.b32.xlu0 %v799, 32
    %v843 = vpop.permute.xlu0 %842
    %844 = vrot.lane.b32.xlu0 %v800, 32
    %v845 = vpop.permute.xlu0 %844
    %846 = vrot.lane.b32.xlu0 %v801, 32
    %v847 = vpop.permute.xlu0 %846
    %848 = vrot.lane.b32.xlu0 %v802, 32
    %v849 = vpop.permute.xlu0 %848
    %850 = vrot.lane.b32.xlu0 %v803, 32
    %v851 = vpop.permute.xlu0 %850
    %v868 = vadd.f32 %v627, %v821
    %v869 = vadd.f32 %v628, %v823
    %v870 = vadd.f32 %v629, %v825
    %v871 = vadd.f32 %v630, %v827
    %v872 = vadd.f32 %v631, %v829
    %v873 = vadd.f32 %v632, %v831
    %v874 = vadd.f32 %v633, %v833
    %v875 = vadd.f32 %v634, %v835
    %v876 = vadd.f32 %v635, %v837
    %v877 = vadd.f32 %v636, %v839
    %v878 = vadd.f32 %v637, %v841
    %v879 = vadd.f32 %v638, %v843
    %v880 = vadd.f32 %v639, %v845
    %v881 = vadd.f32 %v640, %v847
    %v882 = vadd.f32 %v641, %v849
    %v883 = vadd.f32 %v642, %v851
    %vm884 = vcmask 523520
    %v885 = vsel %vm884, %v868, -inf
    %v886 = vsel %vm884, %v869, -inf
    %v887 = vmax.f32 %v885, %v886
    %v888 = vrot.slane %v887, 4
    %v889 = vmax.f32 %v887, %v888
    %v890 = vrot.slane %v889, 2
    %v891 = vmax.f32 %v889, %v890
    %v892 = vrot.slane %v891, 1
    %v893 = vmax.f32 %v891, %v892
    %v894 = vsel %vm884, %v870, -inf
    %v895 = vsel %vm884, %v871, -inf
    %v896 = vmax.f32 %v894, %v895
    %v897 = vrot.slane %v896, 4
    %v898 = vmax.f32 %v896, %v897
    %v899 = vrot.slane %v898, 2
    %v900 = vmax.f32 %v898, %v899
    %v901 = vrot.slane %v900, 1
    %v902 = vmax.f32 %v900, %v901
    %v903 = vsel %vm884, %v872, -inf
    %v904 = vsel %vm884, %v873, -inf
    %v905 = vmax.f32 %v903, %v904
    %v906 = vrot.slane %v905, 4
    %v907 = vmax.f32 %v905, %v906
    %v908 = vrot.slane %v907, 2
    %v909 = vmax.f32 %v907, %v908
    %v910 = vrot.slane %v909, 1
    %v911 = vmax.f32 %v909, %v910
    %v912 = vsel %vm884, %v874, -inf
    %v913 = vsel %vm884, %v875, -inf
    %v914 = vmax.f32 %v912, %v913
    %v915 = vrot.slane %v914, 4
    %v916 = vmax.f32 %v914, %v915
    %v917 = vrot.slane %v916, 2
    %v918 = vmax.f32 %v916, %v917
    %v919 = vrot.slane %v918, 1
    %v920 = vmax.f32 %v918, %v919
    %v921 = vsel %vm884, %v876, -inf
    %v922 = vsel %vm884, %v877, -inf
    %v923 = vmax.f32 %v921, %v922
    %v924 = vrot.slane %v923, 4
    %v925 = vmax.f32 %v923, %v924
    %v926 = vrot.slane %v925, 2
    %v927 = vmax.f32 %v925, %v926
    %v928 = vrot.slane %v927, 1
    %v929 = vmax.f32 %v927, %v928
    %v930 = vsel %vm884, %v878, -inf
    %v931 = vsel %vm884, %v879, -inf
    %v932 = vmax.f32 %v930, %v931
    %v933 = vrot.slane %v932, 4
    %v934 = vmax.f32 %v932, %v933
    %v935 = vrot.slane %v934, 2
    %v936 = vmax.f32 %v934, %v935
    %v937 = vrot.slane %v936, 1
    %v938 = vmax.f32 %v936, %v937
    %v939 = vsel %vm884, %v880, -inf
    %v940 = vsel %vm884, %v881, -inf
    %v941 = vmax.f32 %v939, %v940
    %v942 = vrot.slane %v941, 4
    %v943 = vmax.f32 %v941, %v942
    %v944 = vrot.slane %v943, 2
    %v945 = vmax.f32 %v943, %v944
    %v946 = vrot.slane %v945, 1
    %v947 = vmax.f32 %v945, %v946
    %v948 = vsel %vm884, %v882, -inf
    %v949 = vsel %vm884, %v883, -inf
    %v950 = vmax.f32 %v948, %v949
    %v951 = vrot.slane %v950, 4
    %v952 = vmax.f32 %v950, %v951
    %v953 = vrot.slane %v952, 2
    %v954 = vmax.f32 %v952, %v953
    %v955 = vrot.slane %v954, 1
    %v956 = vmax.f32 %v954, %v955
    %v957 = vld [vmem:[%s2] sm:$0x1]
    %v959 = vlaneseq
    %v960 = vshrl.u32 %v959, 7
    %v961 = vsub.s32 0, %v960
    %v962 = vrot.slane %v957, %v961
    %963 = vrot.lane.b32.xlu0 %v962, 32
    %v964 = vpop.permute.xlu0 %963
    %v966 = vadd.f32 %v893, %v964
    %v967 = vadd.f32 %v902, %v964
    %v968 = vadd.f32 %v911, %v964
    %v969 = vadd.f32 %v920, %v964
    %v970 = vadd.f32 %v929, %v964
    %v971 = vadd.f32 %v938, %v964
    %v972 = vadd.f32 %v947, %v964
    %v973 = vadd.f32 %v956, %v964
    %v982 = vrot.slane %v967, 7
    %vm983 = vcmask 1041409
    %v984 = vsel %vm983, %v982, %v966
    %v985 = vrot.slane %v968, 6
    %vm986 = vcmask 1042434
    %v987 = vsel %vm986, %v985, %v984
    %v988 = vrot.slane %v969, 5
    %vm989 = vcmask 1043459
    %v990 = vsel %vm989, %v988, %v987
    %v991 = vrot.slane %v970, 4
    %vm992 = vcmask 1044484
    %v993 = vsel %vm992, %v991, %v990
    %v994 = vrot.slane %v971, 3
    %vm995 = vcmask 1045509
    %v996 = vsel %vm995, %v994, %v993
    %v997 = vrot.slane %v972, 2
    %vm998 = vcmask 1046534
    %v999 = vsel %vm998, %v997, %v996
    %v1000 = vrot.slane %v973, 1
    %vm1001 = vcmask 1047559
    %v1002 = vsel %vm1001, %v1000, %v999
    %1003 = vrot.lane.b32.xlu0 %v1002, 96
    %v1004 = vpop.permute.xlu0 %1003
    %1006 = vst.msk [vmem:[#allocation7] sm:$0xff] %vm63, %v1004
    // Predicated region
    $region22: #{tpu_custom_call.1} parent=1 // pred_check
      _
    $region23: #{tpu_custom_call.1} parent=1 // pred_check_branch
      %1008 = sbr.rel (0) target = $region25
    $region24: #{tpu_custom_call.1} parent=1 // pred_region
      %s1010 = ssub.s32 128, 128
      %1011 = vsyncadd [#allocation4], %s1010
      %s1013 = sshll.u32 [#allocation7], 4
      %s1014 = int_to_ptr.vmem [resolvable:$true] %s1013
      %1016 = dma.vmem_to_hbm [thread:$0]  %s1014, 128, %s3, [#allocation4]
    $region25: #{tpu_custom_call.1} parent=1 // pred_fallthru
      _
    // Predicated region
    $region26: #{tpu_custom_call.1} parent=1 // pred_check
      _
    $region27: #{tpu_custom_call.1} parent=1 // pred_check_branch
      %1018 = sbr.rel (0) target = $region29
    $region28: #{tpu_custom_call.1} parent=1 // pred_region
      %1019 = dma.done [#allocation4], 128
    $region29: #{tpu_custom_call.1} parent=1 // pred_fallthru
      _
    %1020 = vsyncpa [#allocation3], 1
    %1021 = vsyncpa [#allocation6], 1
    %1022 = vsyncpa [#allocation4], 1

</llo_original>
